<compile_context>
chip_gen: v6e
topology: v6e:2x2x1
jax: 0.10.0
libtpu: 0.0.40
codegen_flags: <defaults>
</compile_context>

<pallas_src>
import functools
import math

import jax
import jax.numpy as jnp
from jax.experimental import pallas as pl
from jax.experimental.pallas import tpu as pltpu


# ---------------------------------------------------------------------------
# Generation-aware VMEM budgeting
# ---------------------------------------------------------------------------
def _vmem_budget_bytes(frac=0.70):
    """~70% of physical per-core VMEM (v5e/v6e: 128 MiB -> ~90 MiB, v7x: 64 MiB ->
    ~45 MiB). Never request the full physical VMEM: leave headroom for compiler
    internal scratch and other buffers."""
    cap = 64 << 20  # conservative fallback = v7x per-TensorCore VMEM
    try:
        cap = int(getattr(pltpu.get_tpu_info(), "vmem_capacity_bytes", cap))
    except Exception:
        pass
    return int(cap * frac)


def choose_tn(input_dim, hidden_dim, w_dtype=jnp.bfloat16, vmem_budget=None):
    """VMEM-aware hidden-tile width: the largest 128-multiple dividing H (or H itself)
    whose double-buffered fused [r|z|n] weight slabs fit in ~40% of the VMEM budget.
    For big H, tiles wider than 512 are skipped so each TensorCore keeps several grid
    steps (v7x megacore sharding + DMA/MXU pipeline fill)."""
    D, H = input_dim, hidden_dim
    if vmem_budget is None:
        vmem_budget = _vmem_budget_bytes()
    w_bytes = jnp.dtype(w_dtype).itemsize
    cands = sorted({H} | {t for t in range(128, H, 128) if H % t == 0}, reverse=True)
    for tn in cands:
        if H > 1024 and tn > 512:
            continue
        if 2 * (D + H) * 3 * tn * w_bytes <= 0.4 * vmem_budget:
            return tn
    return cands[-1]


# ---------------------------------------------------------------------------
# One-time parameter packing
# ---------------------------------------------------------------------------
def pack_gru_params(params, *, tn=None, dtype=jnp.bfloat16):
    """One-time packing (NOT per step): fuse the six Linears into two weight matrices
    whose output columns are interleaved per hidden tile ([r_j|z_j|n_j] for tile j),
    pre-sum the r/z biases, and store weights in `dtype` (bf16 by default: the cell is
    weight-streaming bound, so weight bytes ~= wall clock). Biases stay f32.
    tn=None packs a single tile (tn == H, plain [r|z|n] concat) -- the layout required
    by gru_cell_mod_sequence."""
    H = params["b_hn"].shape[0]
    if tn is None:
        tn = H
    assert H % tn == 0, "hidden_dim must be a multiple of the tile size tn"
    nt = H // tn

    def interleave_w(w_r, w_z, w_n):
        fan_in = w_r.shape[0]
        stk = jnp.stack([w.reshape(fan_in, nt, tn) for w in (w_r, w_z, w_n)], axis=2)
        return stk.reshape(fan_in, 3 * H).astype(dtype)

    def interleave_b(b_r, b_z, b_n):
        stk = jnp.stack([b.reshape(nt, tn) for b in (b_r, b_z, b_n)], axis=1)
        return stk.reshape(1, 3 * H).astype(jnp.float32)

    return dict(
        Wx=interleave_w(params["W_ir"], params["W_iz"], params["W_in"]),
        Wh=interleave_w(params["W_hr"], params["W_hz"], params["W_hn"]),
        bx=interleave_b(params["b_ir"] + params["b_hr"],
                        params["b_iz"] + params["b_hz"],
                        params["b_in"]),
        bhn=params["b_hn"].reshape(1, H).astype(jnp.float32),
    )


# ---------------------------------------------------------------------------
# Single-step kernel (matches GRUCellMod.forward)
# ---------------------------------------------------------------------------
def _gru_cell_kernel(x_ref, h_ref, wx_ref, wh_ref, bx_ref, bhn_ref, out_ref):
    """One hidden tile (tn columns of r, z, n): two fused MXU matmuls + gates."""
    tn = out_ref.shape[1]
    nt = x_ref.shape[1] // tn
    j = pl.program_id(0)

    xv = x_ref[...]        # already in the weight/MXU dtype (cast once in the wrapper)
    hv = h_ref[...]

    gx = jnp.dot(xv, wx_ref[...], preferred_element_type=jnp.float32)
    gx = gx + bx_ref[...]                         # pre-summed r/z biases + b_in (f32)
    gh = jnp.dot(hv, wh_ref[...], preferred_element_type=jnp.float32)

    # Per-tile column layout of the fused matmuls is [r | z | n], each tn wide.
    r = jax.nn.sigmoid(gx[:, :tn] + gh[:, :tn])
    z = jax.nn.sigmoid(gx[:, tn:2 * tn] + gh[:, tn:2 * tn])
    n = jnp.tanh(gx[:, 2 * tn:] + r * (gh[:, 2 * tn:] + bhn_ref[...]))

    # Residual x tile comes straight from the already-resident x operand: no separate
    # DMA stream / double-buffered VMEM tile. nt is static; select over static
    # lane-aligned slices keeps the lowering trivially supported.
    if nt == 1:
        x_res = xv
    else:
        x_res = xv[:, 0:tn]
        for k in range(1, nt):
            x_res = jnp.where(j == k, xv[:, k * tn:(k + 1) * tn], x_res)
    x_res = x_res.astype(jnp.float32)

    out_ref[...] = (z * n + (1.0 - z) * x_res).astype(out_ref.dtype)


@functools.partial(jax.jit, static_argnames=("tn",))
def gru_cell_mod(inp, ht_1, packed, *, tn=None):
    """GRUCellMod forward (one step). `packed` = pack_gru_params(params, tn=tn)."""
    B, D = inp.shape
    H = ht_1.shape[1]
    assert D == H, "GRUCellMod forward requires input_dim == hidden_dim"
    if tn is None:
        tn = H
    assert H % tn == 0 and (tn % 128 == 0 or tn == H), \
        "tn must divide H and be a multiple of 128 (or equal H)"
    nt = H // tn

    Wx, Wh, bx, bhn = packed["Wx"], packed["Wh"], packed["bx"], packed["bhn"]
    w_dtype = Wx.dtype
    # Cast activations to the weight/MXU dtype once here (not per grid step).
    x_in = inp.astype(w_dtype)
    h_in = ht_1.astype(w_dtype)

    a_bytes = jnp.dtype(w_dtype).itemsize
    o_bytes = jnp.dtype(inp.dtype).itemsize
    budget = _vmem_budget_bytes()
    # Footprint: x/h (constant block index -> DMA'd once, but still 2 buffers each),
    # double-buffered fused weight slabs, f32 bias slabs, output tile, + headroom.
    per_step = (2 * (B * D + B * H) * a_bytes
                + 2 * (D + H) * 3 * tn * a_bytes
                + 2 * 4 * tn * 4
                + 2 * B * tn * o_bytes)
    vmem_limit = int(min(max(per_step + (8 << 20), 16 << 20), budget))

    in_specs = [
        pl.BlockSpec((B, D), lambda j: (0, 0)),       # x (full; matmul operand + residual)
        pl.BlockSpec((B, H), lambda j: (0, 0)),       # h (full; matmul operand)
        pl.BlockSpec((D, 3 * tn), lambda j: (0, j)),  # fused x-path weights [r|z|n] tile
        pl.BlockSpec((H, 3 * tn), lambda j: (0, j)),  # fused h-path weights [r|z|n] tile
        pl.BlockSpec((1, 3 * tn), lambda j: (0, j)),  # fused / pre-summed biases (f32)
        pl.BlockSpec((1, tn), lambda j: (0, j)),      # b_hn (multiplied by r)
    ]
    out_spec = pl.BlockSpec((B, tn), lambda j: (0, j))

    return pl.pallas_call(
        _gru_cell_kernel,
        out_shape=jax.ShapeDtypeStruct((B, H), inp.dtype),
        grid=(nt,),
        in_specs=in_specs,
        out_specs=out_spec,
        compiler_params=pltpu.CompilerParams(
            dimension_semantics=("parallel",),
            vmem_limit_bytes=vmem_limit,
        ),
    )(x_in, h_in, Wx, Wh, bx, bhn)


# ---------------------------------------------------------------------------
# Weight-resident sequence kernel (time loop hoisted into one pallas_call)
# ---------------------------------------------------------------------------
def _gru_seq_kernel(gx_ref, x_ref, h0_ref, wh_ref, bhn_ref, out_ref, h_carry):
    """One timestep. gx (input projection + fused biases) is precomputed for all T
    steps; only the h-path matmul is on the sequential critical path. Wh/bhn/h0 have
    constant block indices, so they are DMA'd once and stay VMEM-resident for the
    whole T-step grid."""
    H = out_ref.shape[-1]
    t = pl.program_id(0)

    @pl.when(t == 0)
    def _():
        h_carry[...] = h0_ref[...].astype(jnp.float32)

    gh = jnp.dot(h_carry[...].astype(wh_ref.dtype), wh_ref[...],
                 preferred_element_type=jnp.float32)
    gx = gx_ref[0]                       # (B, 3H) f32; x-path + pre-summed biases
    x_t = x_ref[0].astype(jnp.float32)   # (B, H) residual

    r = jax.nn.sigmoid(gx[:, :H] + gh[:, :H])
    z = jax.nn.sigmoid(gx[:, H:2 * H] + gh[:, H:2 * H])
    n = jnp.tanh(gx[:, 2 * H:] + r * (gh[:, 2 * H:] + bhn_ref[...]))

    h_new = z * n + (1.0 - z) * x_t
    h_carry[...] = h_new
    out_ref[0] = h_new.astype(out_ref.dtype)


@jax.jit
def gru_cell_mod_sequence(xs, h0, packed_full):
    """Run GRUCellMod over a whole sequence xs[t] in ONE pallas_call.
    `packed_full` must be pack_gru_params(params, tn=None) (tn == H layout)."""
    T, B, H = xs.shape
    Wx, Wh, bx, bhn = (packed_full["Wx"], packed_full["Wh"],
                       packed_full["bx"], packed_full["bhn"])
    assert Wh.shape == (H, 3 * H), "sequence kernel needs tn == H packing"
    w_dtype = Wh.dtype
    w_bytes = jnp.dtype(w_dtype).itemsize
    o_bytes = jnp.dtype(xs.dtype).itemsize

    # h-independent projection for ALL timesteps as one dense matmul (full MXU rows).
    xs_c = xs.astype(w_dtype)
    gx = jnp.dot(xs_c.reshape(T * B, H), Wx, preferred_element_type=jnp.float32)
    gx = (gx + bx).reshape(T, B, 3 * H)

    budget = _vmem_budget_bytes()
    resident = 2 * (H * 3 * H * w_bytes + B * H * 4 + H * 4)     # Wh, h0, b_hn buffers
    per_step = 2 * (B * 3 * H * 4 + B * H * w_bytes + B * H * o_bytes) + B * H * 4
    assert resident + per_step + (4 << 20) <= budget, (
        "hidden_dim too large for the weight-resident sequence kernel on this chip; "
        "run gru_cell_mod per step with hidden tiling instead")
    vmem_limit = int(min(max(resident + per_step + (8 << 20), 16 << 20), budget))

    in_specs = [
        pl.BlockSpec((1, B, 3 * H), lambda t: (t, 0, 0)),  # gx_t
        pl.BlockSpec((1, B, H), lambda t: (t, 0, 0)),      # x_t (residual)
        pl.BlockSpec((B, H), lambda t: (0, 0)),            # h0 (read at t == 0)
        pl.BlockSpec((H, 3 * H), lambda t: (0, 0)),        # Wh, VMEM-resident across T
        pl.BlockSpec((1, H), lambda t: (0, 0)),            # b_hn
    ]
    out_specs = pl.BlockSpec((1, B, H), lambda t: (t, 0, 0))

    return pl.pallas_call(
        _gru_seq_kernel,
        out_shape=jax.ShapeDtypeStruct((T, B, H), xs.dtype),
        grid=(T,),
        in_specs=in_specs,
        out_specs=out_specs,
        scratch_shapes=[pltpu.VMEM((B, H), jnp.float32)],   # h_{t-1} carry
        compiler_params=pltpu.CompilerParams(
            dimension_semantics=("arbitrary",),             # recurrence is sequential
            vmem_limit_bytes=vmem_limit,
        ),
    )(gx, xs_c, h0, Wh, bhn)


# ---------------------------------------------------------------------------
# Init + pure-JAX references
# ---------------------------------------------------------------------------
def init_params(key, input_dim, hidden_dim, dtype=jnp.float32):
    """PyTorch-Linear-style init: U(-1/sqrt(fan_in), 1/sqrt(fan_in)).
    Weights stored pre-transposed as [in_features, out_features]."""
    names_fanin = [
        ("W_ir", input_dim), ("W_hr", hidden_dim),
        ("W_iz", input_dim), ("W_hz", hidden_dim),
        ("W_in", input_dim), ("W_hn", hidden_dim),
    ]
    params = {}
    keys = jax.random.split(key, 2 * len(names_fanin))
    for i, (name, fan_in) in enumerate(names_fanin):
        bound = 1.0 / math.sqrt(fan_in)
        params[name] = jax.random.uniform(
            keys[2 * i], (fan_in, hidden_dim), dtype, minval=-bound, maxval=bound)
        params[name.replace("W_", "b_")] = jax.random.uniform(
            keys[2 * i + 1], (hidden_dim,), dtype, minval=-bound, maxval=bound)
    return params


def gru_cell_mod_ref(inp, ht_1, params, quant_dtype=None):
    """Pure-JAX reference. quant_dtype=None reproduces the f32 PyTorch forward;
    quant_dtype=jnp.bfloat16 mimics the kernel's bf16 operands (f32 accumulation)."""
    def q(a):
        return a if quant_dtype is None else a.astype(quant_dtype).astype(jnp.float32)
    def lin(v, w, b):
        return jnp.dot(q(v), q(w)) + b
    r = jax.nn.sigmoid(lin(inp, params["W_ir"], params["b_ir"]) +
                       lin(ht_1, params["W_hr"], params["b_hr"]))
    z = jax.nn.sigmoid(lin(inp, params["W_iz"], params["b_iz"]) +
                       lin(ht_1, params["W_hz"], params["b_hz"]))
    n = jnp.tanh(lin(inp, params["W_in"], params["b_in"]) +
                 r * lin(ht_1, params["W_hn"], params["b_hn"]))
    return z * n + (1.0 - z) * q(inp)


def gru_seq_ref(xs, h0, params, quant_dtype=None):
    def step(h, x):
        h_new = gru_cell_mod_ref(x, h, params, quant_dtype=quant_dtype)
        return h_new, h_new
    _, hs = jax.lax.scan(step, h0, xs)
    return hs


if __name__ == "__main__":
    batch, hidden, seq_len = 8, 256, 6   # input_dim must equal hidden_dim

    key = jax.random.PRNGKey(0)
    k_x, k_h, k_seq, k_p = jax.random.split(key, 4)
    x = jax.random.normal(k_x, (batch, hidden), jnp.float32)
    h0 = jax.random.normal(k_h, (batch, hidden), jnp.float32)
    xs = jax.random.normal(k_seq, (seq_len, batch, hidden), jnp.float32)
    params = init_params(k_p, hidden, hidden, jnp.float32)

    ref = gru_cell_mod_ref(x, h0, params)

    # 1) f32 weights, tiled hidden dim (grid of two lane-dense tiles): exact-path check.
    packed_f32 = pack_gru_params(params, tn=128, dtype=jnp.float32)
    out_f32 = jax.block_until_ready(gru_cell_mod(x, h0, packed_f32, tn=128))
    assert out_f32.shape == (batch, hidden)
    err = float(jnp.max(jnp.abs(out_f32 - ref)))
    assert err < 1e-2, f"f32 tiled path mismatch vs reference: max|diff|={err}"

    # 2) bf16 weights (weight-streaming fast path), VMEM-aware tile width.
    tn = choose_tn(hidden, hidden, jnp.bfloat16)   # == hidden here -> single grid step
    packed_bf16 = pack_gru_params(params, tn=tn, dtype=jnp.bfloat16)
    out_bf16 = jax.block_until_ready(gru_cell_mod(x, h0, packed_bf16, tn=tn))
    err = float(jnp.max(jnp.abs(out_bf16 - ref)))
    assert err < 5e-2, f"bf16 path mismatch vs f32 reference: max|diff|={err}"

    # 3) Weight-resident sequence kernel: T GRU steps in one pallas_call.
    packed_seq = pack_gru_params(params, tn=None, dtype=jnp.bfloat16)  # tn == H layout
    hs = jax.block_until_ready(gru_cell_mod_sequence(xs, h0, packed_seq))
    assert hs.shape == (seq_len, batch, hidden)
    hs_ref = gru_seq_ref(xs, h0, params, quant_dtype=jnp.bfloat16)
    err = float(jnp.max(jnp.abs(hs - hs_ref)))
    assert err < 2e-2, f"sequence kernel mismatch vs bf16-consistent ref: max|diff|={err}"

    print("KERNEL_OK")
</pallas_src>

<mosaic_0001>
module attributes {stable_mosaic.version = 11 : i64} {
  func.func @_gru_cell_kernel(%arg0: i32, %arg1: memref<8x256xf32, #tpu.memory_space<vmem>>, %arg2: memref<8x256xf32, #tpu.memory_space<vmem>>, %arg3: memref<256x384xf32, #tpu.memory_space<vmem>>, %arg4: memref<256x384xf32, #tpu.memory_space<vmem>>, %arg5: memref<1x384xf32, #tpu.memory_space<vmem>>, %arg6: memref<1x128xf32, #tpu.memory_space<vmem>>, %arg7: memref<8x128xf32, #tpu.memory_space<vmem>>) attributes {dimension_semantics = [#tpu.dimension_semantics<parallel>], iteration_bounds = array<i64: 2>, scalar_prefetch = 0 : i64, scratch_operands = 0 : i64, tpu.core_type = #tpu.core_type<tc>, window_params = [{pipeline_mode = #tpu.pipeline_mode<synchronous>, transform_indices = @transform_0, window_bounds = array<i64: 8, 256>}, {pipeline_mode = #tpu.pipeline_mode<synchronous>, transform_indices = @transform_1, window_bounds = array<i64: 8, 256>}, {transform_indices = @transform_2, window_bounds = array<i64: 256, 384>}, {transform_indices = @transform_3, window_bounds = array<i64: 256, 384>}, {transform_indices = @transform_4, window_bounds = array<i64: 1, 384>}, {transform_indices = @transform_5, window_bounds = array<i64: 1, 128>}, {transform_indices = @transform_6, window_bounds = array<i64: 8, 128>}]} {
    %c0 = arith.constant 0 : index
    %c0_0 = arith.constant 0 : index
    %0 = vector.load %arg1[%c0, %c0_0] : memref<8x256xf32, #tpu.memory_space<vmem>>, vector<8x256xf32>
    %c0_1 = arith.constant 0 : index
    %c0_2 = arith.constant 0 : index
    %1 = vector.load %arg2[%c0_1, %c0_2] : memref<8x256xf32, #tpu.memory_space<vmem>>, vector<8x256xf32>
    %c0_3 = arith.constant 0 : index
    %c0_4 = arith.constant 0 : index
    %2 = vector.load %arg3[%c0_3, %c0_4] : memref<256x384xf32, #tpu.memory_space<vmem>>, vector<256x384xf32>
    %cst = arith.constant dense<0.000000e+00> : vector<8x384xf32>
    %3 = tpu.matmul %0, %2, %cst {dimension_numbers = #tpu.dot_dimension_numbers<[1], [0], [0], [1], [0, 0, 1, 1], [], []>} : vector<8x256xf32>, vector<256x384xf32>, vector<8x384xf32> -> vector<8x384xf32>
    %c0_5 = arith.constant 0 : index
    %c0_6 = arith.constant 0 : index
    %4 = vector.load %arg5[%c0_5, %c0_6] : memref<1x384xf32, #tpu.memory_space<vmem>>, vector<1x384xf32>
    %5 = vector.broadcast %4 : vector<1x384xf32> to vector<8x384xf32>
    %6 = arith.addf %3, %5 : vector<8x384xf32>
    %c0_7 = arith.constant 0 : index
    %c0_8 = arith.constant 0 : index
    %7 = vector.load %arg4[%c0_7, %c0_8] : memref<256x384xf32, #tpu.memory_space<vmem>>, vector<256x384xf32>
    %cst_9 = arith.constant dense<0.000000e+00> : vector<8x384xf32>
    %8 = tpu.matmul %1, %7, %cst_9 {dimension_numbers = #tpu.dot_dimension_numbers<[1], [0], [0], [1], [0, 0, 1, 1], [], []>} : vector<8x256xf32>, vector<256x384xf32>, vector<8x384xf32> -> vector<8x384xf32>
    %9 = vector.extract_strided_slice %6 {offsets = [0, 0], sizes = [8, 128], strides = [1, 1]} : vector<8x384xf32> to vector<8x128xf32>
    %10 = vector.extract_strided_slice %8 {offsets = [0, 0], sizes = [8, 128], strides = [1, 1]} : vector<8x384xf32> to vector<8x128xf32>
    %11 = arith.addf %9, %10 : vector<8x128xf32>
    %12 = arith.negf %11 : vector<8x128xf32>
    %13 = math.exp %12 : vector<8x128xf32>
    %cst_10 = arith.constant 1.000000e+00 : f32
    %14 = vector.broadcast %cst_10 : f32 to vector<8x128xf32>
    %15 = arith.addf %14, %13 : vector<8x128xf32>
    %16 = arith.divf %14, %15 : vector<8x128xf32>
    %17 = vector.extract_strided_slice %6 {offsets = [0, 128], sizes = [8, 128], strides = [1, 1]} : vector<8x384xf32> to vector<8x128xf32>
    %18 = vector.extract_strided_slice %8 {offsets = [0, 128], sizes = [8, 128], strides = [1, 1]} : vector<8x384xf32> to vector<8x128xf32>
    %19 = arith.addf %17, %18 : vector<8x128xf32>
    %20 = arith.negf %19 : vector<8x128xf32>
    %21 = math.exp %20 : vector<8x128xf32>
    %cst_11 = arith.constant 1.000000e+00 : f32
    %22 = vector.broadcast %cst_11 : f32 to vector<8x128xf32>
    %23 = arith.addf %22, %21 : vector<8x128xf32>
    %24 = arith.divf %22, %23 : vector<8x128xf32>
    %25 = vector.extract_strided_slice %6 {offsets = [0, 256], sizes = [8, 128], strides = [1, 1]} : vector<8x384xf32> to vector<8x128xf32>
    %26 = vector.extract_strided_slice %8 {offsets = [0, 256], sizes = [8, 128], strides = [1, 1]} : vector<8x384xf32> to vector<8x128xf32>
    %c0_12 = arith.constant 0 : index
    %c0_13 = arith.constant 0 : index
    %27 = vector.load %arg6[%c0_12, %c0_13] : memref<1x128xf32, #tpu.memory_space<vmem>>, vector<1x128xf32>
    %28 = vector.broadcast %27 : vector<1x128xf32> to vector<8x128xf32>
    %29 = arith.addf %26, %28 : vector<8x128xf32>
    %30 = arith.mulf %16, %29 : vector<8x128xf32>
    %31 = arith.addf %25, %30 : vector<8x128xf32>
    %32 = math.tanh %31 : vector<8x128xf32>
    %33 = vector.extract_strided_slice %0 {offsets = [0, 0], sizes = [8, 128], strides = [1, 1]} : vector<8x256xf32> to vector<8x128xf32>
    %c1_i32 = arith.constant 1 : i32
    %34 = arith.cmpi eq, %arg0, %c1_i32 : i32
    %35 = vector.extract_strided_slice %0 {offsets = [0, 128], sizes = [8, 128], strides = [1, 1]} : vector<8x256xf32> to vector<8x128xf32>
    %36 = arith.select %34, %35, %33 : vector<8x128xf32>
    %37 = arith.mulf %24, %32 : vector<8x128xf32>
    %cst_14 = arith.constant 1.000000e+00 : f32
    %38 = vector.broadcast %cst_14 : f32 to vector<8x128xf32>
    %39 = arith.subf %38, %24 : vector<8x128xf32>
    %40 = arith.mulf %39, %36 : vector<8x128xf32>
    %41 = arith.addf %37, %40 : vector<8x128xf32>
    %c0_15 = arith.constant 0 : index
    %c0_16 = arith.constant 0 : index
    %42 = vector.load %arg7[%c0_15, %c0_16] : memref<8x128xf32, #tpu.memory_space<vmem>>, vector<8x128xf32>
    tpu.vector_store %arg7[%c0_15, %c0_16], %41 {strides = array<i32>} : memref<8x128xf32, #tpu.memory_space<vmem>>, vector<8x128xf32>,
    return
  }
  func.func @transform_0(%arg0: i32) -> (i32, i32) {
    %c0_i32 = arith.constant 0 : i32
    %c0_i32_0 = arith.constant 0 : i32
    %c0_i32_1 = arith.constant 0 : i32
    return %c0_i32, %c0_i32_0 : i32, i32
  }
  func.func @transform_1(%arg0: i32) -> (i32, i32) {
    %c0_i32 = arith.constant 0 : i32
    %c0_i32_0 = arith.constant 0 : i32
    %c0_i32_1 = arith.constant 0 : i32
    return %c0_i32, %c0_i32_0 : i32, i32
  }
  func.func @transform_2(%arg0: i32) -> (i32, i32) {
    %c0_i32 = arith.constant 0 : i32
    %c0_i32_0 = arith.constant 0 : i32
    return %c0_i32, %arg0 : i32, i32
  }
  func.func @transform_3(%arg0: i32) -> (i32, i32) {
    %c0_i32 = arith.constant 0 : i32
    %c0_i32_0 = arith.constant 0 : i32
    return %c0_i32, %arg0 : i32, i32
  }
  func.func @transform_4(%arg0: i32) -> (i32, i32) {
    %c0_i32 = arith.constant 0 : i32
    %c0_i32_0 = arith.constant 0 : i32
    return %c0_i32, %arg0 : i32, i32
  }
  func.func @transform_5(%arg0: i32) -> (i32, i32) {
    %c0_i32 = arith.constant 0 : i32
    %c0_i32_0 = arith.constant 0 : i32
    return %c0_i32, %arg0 : i32, i32
  }
  func.func @transform_6(%arg0: i32) -> (i32, i32) {
    %c0_i32 = arith.constant 0 : i32
    %c0_i32_0 = arith.constant 0 : i32
    return %c0_i32, %arg0 : i32, i32
  }
}

</mosaic_0001>

<llo_original>
// kernel: gru_cell_mod.1
$region0: #{gru_cell_mod.1}
  #allocation0 [shape = 'u32[]', space=smem, size = 0x4, offset = 0x4, fixed_abs, tag = 'smem constant byte address 0x4 - core index']
  #allocation1 [shape = 'u32[144,128]{1,0:T(1,128)}', space=vmem, size = 0x12000, scoped, tag = 'internal scratch']
  %s0 = inlined_call_operand.hbm [shape: f32[8,256], index: 0, kind: input, shape index: {}]
  %s1 = inlined_call_operand.hbm [shape: f32[8,256], index: 1, kind: input, shape index: {}]
  %s2 = inlined_call_operand.hbm [shape: f32[256,768], index: 2, kind: input, shape index: {}]
  %s3 = inlined_call_operand.hbm [shape: f32[256,768], index: 3, kind: input, shape index: {}]
  %s4 = inlined_call_operand.vmem [shape: f32[1,768], index: 4, kind: input, shape index: {}]
  %s5 = inlined_call_operand.vmem [shape: f32[1,256], index: 5, kind: input, shape index: {}]
  %s6 = inlined_call_operand.hbm [shape: f32[8,256], index: 6, kind: output, shape index: {}]
  %s7 = sld [smem:[#allocation0]]
  $region73: #{gru_cell_mod.1} parent=0
    _
  %s9 = ssub.s32 1, %s7
  %s10 = scalar_select 0, %s9, %s7
  $region1: #{gru_cell_mod.1} parent=0
    #allocation2 [shape = 'u8[8192]{0}', space=vmem, size = 0x2000, scoped, tag = 'input window, operand 0, single buffered']
    #allocation3 [shape = 's32[2]{0}', space=sflag, size = 0x8, scoped, tag = 'scoped memory for gru_cell_mod.1']
    #allocation4 [shape = 's32[2]{0}', space=sflag, size = 0x8, scoped, tag = 'scoped memory for gru_cell_mod.1']
    #allocation5 [shape = 'u8[8192]{0}', space=vmem, size = 0x2000, scoped, tag = 'input window, operand 1, single buffered']
    #allocation6 [shape = 's32[1]{0}', space=sflag, size = 0x4, scoped, tag = 'scoped memory for gru_cell_mod.1']
    #allocation7 [shape = 'u8[786432]{0}', space=vmem, size = 0xc0000, scoped, tag = 'input window, operand 2']
    #allocation8 [shape = 'u8[786432]{0}', space=vmem, size = 0xc0000, scoped, tag = 'input window, operand 3']
    #allocation9 [shape = 'u8[8192]{0}', space=vmem, size = 0x2000, scoped, tag = 'output window, operand 0']
    %11 = vsyncpa [#allocation3], 0
    %12 = vsyncpa [#allocation6], 0
    %13 = vsyncpa [#allocation4], 0
    %s14 = scalar_lea.sflag [#allocation4], 1
    %15 = vsyncpa %s14, 0
    loop: start=0, step=1, limit=4
    $region2: #{gru_cell_mod.1} parent=1 // loop_pre_header
      _
    $region3: #{gru_cell_mod.1} parent=1 // loop_header
      %s17 = sphi 0, %s21
      %p18 = scmp.ge.s32.totalorder %s17, 4
      %s25 = sphi 0, %s25
      %s27 = sphi 0, %s25
      %s28 = sphi 0, %s27
      %s42 = sphi 0, %s28
      %s46 = sphi 0, %s46
      %s48 = sphi 0, %s46
      %s49 = sphi 0, %s48
      %s63 = sphi 0, %s49
      %s69 = sphi 0, %s71
      %s72 = sphi 0, %s69
      %s73 = sphi 0, %s72
      %s89 = sphi 0, %s73
      %s95 = sphi 0, %s97
      %s98 = sphi 0, %s95
      %s99 = sphi 0, %s98
      %s115 = sphi 0, %s99
      %s121 = sphi 0, %s123
      %s124 = sphi 0, %s121
      %s125 = sphi 0, %s124
      %s141 = sphi 0, %s125
      %s147 = sphi 0, %s149
      %s150 = sphi 0, %s147
      %s151 = sphi 0, %s150
      %s167 = sphi 0, %s151
      %s173 = sphi 0, %s175
      %s176 = sphi 0, %s173
      %s177 = sphi 0, %s176
      %s193 = sphi 0, %s177
    $region4: #{gru_cell_mod.1} parent=1 // loop_header_branch
      %20 = sbr.rel (%p18) target = $region8
    $region5: #{gru_cell_mod.1} parent=1 // loop_body
      %s22 = ssub.s32 %s17, 1
      %s23 = ssub.s32 %s17, 2
      %s24 = sadd.s32 %s17, 1
      %s26 = sadd.s32 %s25, 1
      %p29 = scmp.eq.s32.totalorder %s17, 1
      %p30 = scmp.ne.s32.totalorder %s25, %s27
      %p31 = scmp.eq.s32.totalorder %s17, 0
      %p32 = por %p30, %p31
      %p33 = scmp.ne.s32.totalorder %s25, %s27
      %p34 = scmp.eq.s32.totalorder %s22, 1
      %p35 = por %p33, %p34
      %p36 = scmp.ne.s32.totalorder %s27, %s28
      %p37 = scmp.eq.s32.totalorder %s22, 0
      %p38 = por %p36, %p37
      %p39 = scmp.ne.s32.totalorder %s27, %s28
      %p40 = scmp.eq.s32.totalorder %s23, 1
      %p41 = por %p39, %p40
      %p43 = scmp.ne.s32.totalorder %s28, %s42
      %p44 = scmp.eq.s32.totalorder %s23, 0
      %p45 = por %p43, %p44
      %s47 = sadd.s32 %s46, 1
      %p50 = scmp.eq.s32.totalorder %s17, 1
      %p51 = scmp.ne.s32.totalorder %s46, %s48
      %p52 = scmp.eq.s32.totalorder %s17, 0
      %p53 = por %p51, %p52
      %p54 = scmp.ne.s32.totalorder %s46, %s48
      %p55 = scmp.eq.s32.totalorder %s22, 1
      %p56 = por %p54, %p55
      %p57 = scmp.ne.s32.totalorder %s48, %s49
      %p58 = scmp.eq.s32.totalorder %s22, 0
      %p59 = por %p57, %p58
      %p60 = scmp.ne.s32.totalorder %s48, %s49
      %p61 = scmp.eq.s32.totalorder %s23, 1
      %p62 = por %p60, %p61
      %p64 = scmp.ne.s32.totalorder %s49, %s63
      %p65 = scmp.eq.s32.totalorder %s23, 0
      %p66 = por %p64, %p65
      %s67 = ssub.s32 %s17, %s24
      %p68 = scmp.eq.s32.totalorder %s67, 0
      %s70 = sadd.s32 %s69, 1
      %s71 = scalar_select %p68, %s69, %s70
      %p74 = pneg %p68
      %p75 = scmp.eq.s32.totalorder %s17, 1
      %p76 = por %p74, %p75
      %p77 = scmp.ne.s32.totalorder %s69, %s72
      %p78 = scmp.eq.s32.totalorder %s17, 0
      %p79 = por %p77, %p78
      %p80 = scmp.ne.s32.totalorder %s69, %s72
      %p81 = scmp.eq.s32.totalorder %s22, 1
      %p82 = por %p80, %p81
      %p83 = scmp.ne.s32.totalorder %s72, %s73
      %p84 = scmp.eq.s32.totalorder %s22, 0
      %p85 = por %p83, %p84
      %p86 = scmp.ne.s32.totalorder %s72, %s73
      %p87 = scmp.eq.s32.totalorder %s23, 1
      %p88 = por %p86, %p87
      %p90 = scmp.ne.s32.totalorder %s73, %s89
      %p91 = scmp.eq.s32.totalorder %s23, 0
      %p92 = por %p90, %p91
      %s93 = ssub.s32 %s17, %s24
      %p94 = scmp.eq.s32.totalorder %s93, 0
      %s96 = sadd.s32 %s95, 1
      %s97 = scalar_select %p94, %s95, %s96
      %p100 = pneg %p94
      %p101 = scmp.eq.s32.totalorder %s17, 1
      %p102 = por %p100, %p101
      %p103 = scmp.ne.s32.totalorder %s95, %s98
      %p104 = scmp.eq.s32.totalorder %s17, 0
      %p105 = por %p103, %p104
      %p106 = scmp.ne.s32.totalorder %s95, %s98
      %p107 = scmp.eq.s32.totalorder %s22, 1
      %p108 = por %p106, %p107
      %p109 = scmp.ne.s32.totalorder %s98, %s99
      %p110 = scmp.eq.s32.totalorder %s22, 0
      %p111 = por %p109, %p110
      %p112 = scmp.ne.s32.totalorder %s98, %s99
      %p113 = scmp.eq.s32.totalorder %s23, 1
      %p114 = por %p112, %p113
      %p116 = scmp.ne.s32.totalorder %s99, %s115
      %p117 = scmp.eq.s32.totalorder %s23, 0
      %p118 = por %p116, %p117
      %s119 = ssub.s32 %s17, %s24
      %p120 = scmp.eq.s32.totalorder %s119, 0
      %s122 = sadd.s32 %s121, 1
      %s123 = scalar_select %p120, %s121, %s122
      %p126 = pneg %p120
      %p127 = scmp.eq.s32.totalorder %s17, 1
      %p128 = por %p126, %p127
      %p129 = scmp.ne.s32.totalorder %s121, %s124
      %p130 = scmp.eq.s32.totalorder %s17, 0
      %p131 = por %p129, %p130
      %p132 = scmp.ne.s32.totalorder %s121, %s124
      %p133 = scmp.eq.s32.totalorder %s22, 1
      %p134 = por %p132, %p133
      %p135 = scmp.ne.s32.totalorder %s124, %s125
      %p136 = scmp.eq.s32.totalorder %s22, 0
      %p137 = por %p135, %p136
      %p138 = scmp.ne.s32.totalorder %s124, %s125
      %p139 = scmp.eq.s32.totalorder %s23, 1
      %p140 = por %p138, %p139
      %p142 = scmp.ne.s32.totalorder %s125, %s141
      %p143 = scmp.eq.s32.totalorder %s23, 0
      %p144 = por %p142, %p143
      %s145 = ssub.s32 %s17, %s24
      %p146 = scmp.eq.s32.totalorder %s145, 0
      %s148 = sadd.s32 %s147, 1
      %s149 = scalar_select %p146, %s147, %s148
      %p152 = pneg %p146
      %p153 = scmp.eq.s32.totalorder %s17, 1
      %p154 = por %p152, %p153
      %p155 = scmp.ne.s32.totalorder %s147, %s150
      %p156 = scmp.eq.s32.totalorder %s17, 0
      %p157 = por %p155, %p156
      %p158 = scmp.ne.s32.totalorder %s147, %s150
      %p159 = scmp.eq.s32.totalorder %s22, 1
      %p160 = por %p158, %p159
      %p161 = scmp.ne.s32.totalorder %s150, %s151
      %p162 = scmp.eq.s32.totalorder %s22, 0
      %p163 = por %p161, %p162
      %p164 = scmp.ne.s32.totalorder %s150, %s151
      %p165 = scmp.eq.s32.totalorder %s23, 1
      %p166 = por %p164, %p165
      %p168 = scmp.ne.s32.totalorder %s151, %s167
      %p169 = scmp.eq.s32.totalorder %s23, 0
      %p170 = por %p168, %p169
      %s171 = ssub.s32 %s17, %s24
      %p172 = scmp.eq.s32.totalorder %s171, 0
      %s174 = sadd.s32 %s173, 1
      %s175 = scalar_select %p172, %s173, %s174
      %p178 = pneg %p172
      %p179 = scmp.eq.s32.totalorder %s17, 1
      %p180 = por %p178, %p179
      %p181 = scmp.ne.s32.totalorder %s173, %s176
      %p182 = scmp.eq.s32.totalorder %s17, 0
      %p183 = por %p181, %p182
      %p184 = scmp.ne.s32.totalorder %s173, %s176
      %p185 = scmp.eq.s32.totalorder %s22, 1
      %p186 = por %p184, %p185
      %p187 = scmp.ne.s32.totalorder %s176, %s177
      %p188 = scmp.eq.s32.totalorder %s22, 0
      %p189 = por %p187, %p188
      %p190 = scmp.ne.s32.totalorder %s176, %s177
      %p191 = scmp.eq.s32.totalorder %s23, 1
      %p192 = por %p190, %p191
      %p194 = scmp.ne.s32.totalorder %s177, %s193
      %p195 = scmp.eq.s32.totalorder %s23, 0
      %p196 = por %p194, %p195
      %p197 = scmp.le.s32.totalorder 1, %s17
      %p198 = scmp.lt.s32.totalorder %s17, 3
      %p199 = pnand %p197, %p198
      %p200 = pneg %p199
      // Predicated region
      $region9: #{gru_cell_mod.1} parent=5 // pred_check
        _
      $region10: #{gru_cell_mod.1} parent=5 // pred_check_branch
        %202 = sbr.rel (%p199) target = $region12
      $region11: #{gru_cell_mod.1} parent=5 // pred_region
        %s203 = ssub.s32 %s17, 1
        // Predicated region
        $region13: #{gru_cell_mod.1} parent=11 // pred_check
          %p204 = pneg %p38
        $region14: #{gru_cell_mod.1} parent=11 // pred_check_branch
          %206 = sbr.rel (%p204) target = $region16
        $region15: #{gru_cell_mod.1} parent=11 // pred_region
          %s208 = ssub.s32 256, 256
          %209 = vsyncadd [#allocation3], %s208
          %s211 = sshll.u32 [#allocation2], 4
          %s212 = int_to_ptr.vmem [resolvable:$true] %s211
          %214 = dma.hbm_to_vmem [thread:$0]  %s0, 256, %s212, [#allocation3]
        $region16: #{gru_cell_mod.1} parent=11 // pred_fallthru
          _
        // Predicated region
        $region17: #{gru_cell_mod.1} parent=11 // pred_check
          %p215 = pneg %p59
        $region18: #{gru_cell_mod.1} parent=11 // pred_check_branch
          %217 = sbr.rel (%p215) target = $region20
        $region19: #{gru_cell_mod.1} parent=11 // pred_region
          %s219 = ssub.s32 256, 256
          %220 = vsyncadd [#allocation6], %s219
          %s222 = sshll.u32 [#allocation5], 4
          %s223 = int_to_ptr.vmem [resolvable:$true] %s222
          %225 = dma.hbm_to_vmem [thread:$0]  %s1, 256, %s223, [#allocation6]
        $region20: #{gru_cell_mod.1} parent=11 // pred_fallthru
          _
      $region12: #{gru_cell_mod.1} parent=5 // pred_fallthru
        _
      %p226 = scmp.lt.s32.totalorder %s17, 2
      // Predicated region
      $region21: #{gru_cell_mod.1} parent=5 // pred_check
        %p227 = pneg %p226
      $region22: #{gru_cell_mod.1} parent=5 // pred_check_branch
        %229 = sbr.rel (%p227) target = $region24
      $region23: #{gru_cell_mod.1} parent=5 // pred_region
        // Predicated region
        $region25: #{gru_cell_mod.1} parent=23 // pred_check
          %p230 = pneg %p79
        $region26: #{gru_cell_mod.1} parent=23 // pred_check_branch
          %232 = sbr.rel (%p230) target = $region28
        $region27: #{gru_cell_mod.1} parent=23 // pred_region
          %s233 = sand.u32 %s17, 1
          %s234 = scalar_lea.sflag [#allocation3], %s233
          %s235 = sand.u32 %s69, 1
          %s236 = smul.addr %s235, 768
          %s237 = scalar_lea.vmem [#allocation7], %s236
          %s238 = smul.u32 3, %s17
          %s240 = ssub.s32 12288, 12288
          %241 = vsyncadd %s234, %s240
          %s242 = smul.addr %s238, 128
          %s243 = scalar_lea.hbm %s2, %s242
          %s244 = sshll.u32 %s237, 4
          %s245 = int_to_ptr.vmem [resolvable:$true] %s244
          %250 = dma.hbm_to_vmem [thread:$0]  %s243, 12288, %s245, %s234, 768, 384, 24
        $region28: #{gru_cell_mod.1} parent=23 // pred_fallthru
          _
        // Predicated region
        $region29: #{gru_cell_mod.1} parent=23 // pred_check
          %p251 = pneg %p105
        $region30: #{gru_cell_mod.1} parent=23 // pred_check_branch
          %253 = sbr.rel (%p251) target = $region32
        $region31: #{gru_cell_mod.1} parent=23 // pred_region
          %s254 = sand.u32 %s17, 1
          %s255 = scalar_lea.sflag [#allocation3], %s254
          %s256 = sand.u32 %s95, 1
          %s257 = smul.addr %s256, 768
          %s258 = scalar_lea.vmem [#allocation8], %s257
          %s259 = smul.u32 3, %s17
          %s261 = ssub.s32 12288, 12288
          %262 = vsyncadd %s255, %s261
          %s263 = smul.addr %s259, 128
          %s264 = scalar_lea.hbm %s3, %s263
          %s265 = sshll.u32 %s258, 4
          %s266 = int_to_ptr.vmem [resolvable:$true] %s265
          %271 = dma.hbm_to_vmem [thread:$0]  %s264, 12288, %s266, %s255, 768, 384, 24
        $region32: #{gru_cell_mod.1} parent=23 // pred_fallthru
          _
        // Predicated region
        $region33: #{gru_cell_mod.1} parent=23 // pred_check
          %p272 = pneg %p131
        $region34: #{gru_cell_mod.1} parent=23 // pred_check_branch
          %274 = sbr.rel (%p272) target = $region36
        $region35: #{gru_cell_mod.1} parent=23 // pred_region
          %s275 = smul.u32 3, %s17
          %p276 = scmp.lt.s32.totalorder %s275, 5
          %s277 = scalar_select %p276, %s275, 5
          %s278 = scalar_lea.vmem %s4, %s277
          %s279 = smul.u32 3, %s17
        $region36: #{gru_cell_mod.1} parent=23 // pred_fallthru
          _
        // Predicated region
        $region37: #{gru_cell_mod.1} parent=23 // pred_check
          %p280 = pneg %p157
        $region38: #{gru_cell_mod.1} parent=23 // pred_check_branch
          %282 = sbr.rel (%p280) target = $region40
        $region39: #{gru_cell_mod.1} parent=23 // pred_region
          %p283 = scmp.lt.s32.totalorder %s17, 1
          %s284 = scalar_select %p283, %s17, 1
          %s285 = scalar_lea.vmem %s5, %s284
        $region40: #{gru_cell_mod.1} parent=23 // pred_fallthru
          _
      $region24: #{gru_cell_mod.1} parent=5 // pred_fallthru
        _
      %p286 = scmp.le.s32.totalorder 1, %s17
      %p287 = scmp.lt.s32.totalorder %s17, 3
      %p288 = pnand %p286, %p287
      %p289 = pneg %p288
      // Predicated region
      $region41: #{gru_cell_mod.1} parent=5 // pred_check
        _
      $region42: #{gru_cell_mod.1} parent=5 // pred_check_branch
        %291 = sbr.rel (%p288) target = $region44
      $region43: #{gru_cell_mod.1} parent=5 // pred_region
        %s292 = ssub.s32 %s17, 1
        // Predicated region
        $region45: #{gru_cell_mod.1} parent=43 // pred_check
          %p293 = pneg %p38
        $region46: #{gru_cell_mod.1} parent=43 // pred_check_branch
          %295 = sbr.rel (%p293) target = $region48
        $region47: #{gru_cell_mod.1} parent=43 // pred_region
          %296 = dma.done [#allocation3], 256
        $region48: #{gru_cell_mod.1} parent=43 // pred_fallthru
          _
        // Predicated region
        $region49: #{gru_cell_mod.1} parent=43 // pred_check
          %p297 = pneg %p59
        $region50: #{gru_cell_mod.1} parent=43 // pred_check_branch
          %299 = sbr.rel (%p297) target = $region52
        $region51: #{gru_cell_mod.1} parent=43 // pred_region
          %300 = dma.done [#allocation6], 256
        $region52: #{gru_cell_mod.1} parent=43 // pred_fallthru
          _
        %s301 = sand.u32 %s22, 1
        %s302 = scalar_lea.sflag [#allocation3], %s301
        %s303 = sand.u32 %s72, 1
        %s304 = smul.addr %s303, 768
        %s305 = scalar_lea.vmem [#allocation7], %s304
        // Predicated region
        $region53: #{gru_cell_mod.1} parent=43 // pred_check
          %p306 = pneg %p85
        $region54: #{gru_cell_mod.1} parent=43 // pred_check_branch
          %308 = sbr.rel (%p306) target = $region56
        $region55: #{gru_cell_mod.1} parent=43 // pred_region
          %309 = dma.done %s302, 12288
        $region56: #{gru_cell_mod.1} parent=43 // pred_fallthru
          _
        %s310 = sand.u32 %s22, 1
        %s311 = scalar_lea.sflag [#allocation3], %s310
        %s312 = sand.u32 %s98, 1
        %s313 = smul.addr %s312, 768
        %s314 = scalar_lea.vmem [#allocation8], %s313
        // Predicated region
        $region57: #{gru_cell_mod.1} parent=43 // pred_check
          %p315 = pneg %p111
        $region58: #{gru_cell_mod.1} parent=43 // pred_check_branch
          %317 = sbr.rel (%p315) target = $region60
        $region59: #{gru_cell_mod.1} parent=43 // pred_region
          %318 = dma.done %s311, 12288
        $region60: #{gru_cell_mod.1} parent=43 // pred_fallthru
          _
        %p319 = pneg %p38
        %p320 = pneg %p35
        %p321 = pneg %p59
        %p322 = pneg %p56
        %s323 = sand.u32 %s22, 1
        %s324 = scalar_lea.sflag [#allocation3], %s323
        %s325 = sand.u32 %s72, 1
        %s326 = smul.addr %s325, 768
        %s327 = scalar_lea.vmem [#allocation7], %s326
        %p328 = pneg %p85
        %p329 = pneg %p82
        %s330 = sand.u32 %s22, 1
        %s331 = scalar_lea.sflag [#allocation3], %s330
        %s332 = sand.u32 %s98, 1
        %s333 = smul.addr %s332, 768
        %s334 = scalar_lea.vmem [#allocation8], %s333
        %p335 = pneg %p111
        %p336 = pneg %p108
        %s337 = smul.u32 3, %s22
        %p338 = scmp.lt.s32.totalorder %s337, 5
        %s339 = scalar_select %p338, %s337, 5
        %s340 = scalar_lea.vmem %s4, %s339
        %p341 = pneg %p137
        %p342 = pneg %p134
        %p343 = scmp.lt.s32.totalorder %s22, 1
        %s344 = scalar_select %p343, %s22, 1
        %s345 = scalar_lea.vmem %s5, %s344
        %p346 = pneg %p163
        %p347 = pneg %p160
        %p348 = pneg %p189
        %p349 = pneg %p186
        %s350 = sand.u32 %s176, 1
        %s351 = scalar_lea.sflag [#allocation4], %s350
        %s352 = sand.u32 %s176, 1
        %s353 = smul.addr %s352, 8
        %s354 = scalar_lea.vmem [#allocation9], %s353
        %s355 = smul.u32 3, %s22
        %s356 = smul.u32 3, %s22
        %s357 = smul.u32 3, %s22
        %p358 = scmp.lt.s32.totalorder %s357, 5
        %s359 = scalar_select %p358, %s357, 5
        %s360 = scalar_lea.vmem %s4, %s359
        %s361 = smul.u32 3, %s22
        %p362 = scmp.lt.s32.totalorder %s22, 1
        %s363 = scalar_select %p362, %s22, 1
        %s364 = scalar_lea.vmem %s5, %s363
        %v365 = vld [vmem:[#allocation2] sm:$0xff]
        %v366 = vld [vmem:[#allocation2 + $0x8] sm:$0xff]
        %v367 = vld [vmem:[#allocation5] sm:$0xff]
        %v368 = vld [vmem:[#allocation5 + $0x8] sm:$0xff]
        %v369 = vld [vmem:[%s305] sm:$0xff]
        %v370 = vld [vmem:[%s305 + $0x8] sm:$0xff]
        %v371 = vld [vmem:[%s305 + $0x10] sm:$0xff]
        %v372 = vld [vmem:[%s305 + $0x18] sm:$0xff]
        %v373 = vld [vmem:[%s305 + $0x20] sm:$0xff]
        %v374 = vld [vmem:[%s305 + $0x28] sm:$0xff]
        %v375 = vld [vmem:[%s305 + $0x30] sm:$0xff]
        %v376 = vld [vmem:[%s305 + $0x38] sm:$0xff]
        %v377 = vld [vmem:[%s305 + $0x40] sm:$0xff]
        %v378 = vld [vmem:[%s305 + $0x48] sm:$0xff]
        %v379 = vld [vmem:[%s305 + $0x50] sm:$0xff]
        %v380 = vld [vmem:[%s305 + $0x58] sm:$0xff]
        %v381 = vld [vmem:[%s305 + $0x60] sm:$0xff]
        %v382 = vld [vmem:[%s305 + $0x68] sm:$0xff]
        %v383 = vld [vmem:[%s305 + $0x70] sm:$0xff]
        %v384 = vld [vmem:[%s305 + $0x78] sm:$0xff]
        %v385 = vld [vmem:[%s305 + $0x80] sm:$0xff]
        %v386 = vld [vmem:[%s305 + $0x88] sm:$0xff]
        %v387 = vld [vmem:[%s305 + $0x90] sm:$0xff]
        %v388 = vld [vmem:[%s305 + $0x98] sm:$0xff]
        %v389 = vld [vmem:[%s305 + $0xa0] sm:$0xff]
        %v390 = vld [vmem:[%s305 + $0xa8] sm:$0xff]
        %v391 = vld [vmem:[%s305 + $0xb0] sm:$0xff]
        %v392 = vld [vmem:[%s305 + $0xb8] sm:$0xff]
        %v393 = vld [vmem:[%s305 + $0xc0] sm:$0xff]
        %v394 = vld [vmem:[%s305 + $0xc8] sm:$0xff]
        %v395 = vld [vmem:[%s305 + $0xd0] sm:$0xff]
        %v396 = vld [vmem:[%s305 + $0xd8] sm:$0xff]
        %v397 = vld [vmem:[%s305 + $0xe0] sm:$0xff]
        %v398 = vld [vmem:[%s305 + $0xe8] sm:$0xff]
        %v399 = vld [vmem:[%s305 + $0xf0] sm:$0xff]
        %v400 = vld [vmem:[%s305 + $0xf8] sm:$0xff]
        %v401 = vld [vmem:[%s305 + $0x100] sm:$0xff]
        %v402 = vld [vmem:[%s305 + $0x108] sm:$0xff]
        %v403 = vld [vmem:[%s305 + $0x110] sm:$0xff]
        %v404 = vld [vmem:[%s305 + $0x118] sm:$0xff]
        %v405 = vld [vmem:[%s305 + $0x120] sm:$0xff]
        %v406 = vld [vmem:[%s305 + $0x128] sm:$0xff]
        %v407 = vld [vmem:[%s305 + $0x130] sm:$0xff]
        %v408 = vld [vmem:[%s305 + $0x138] sm:$0xff]
        %v409 = vld [vmem:[%s305 + $0x140] sm:$0xff]
        %v410 = vld [vmem:[%s305 + $0x148] sm:$0xff]
        %v411 = vld [vmem:[%s305 + $0x150] sm:$0xff]
        %v412 = vld [vmem:[%s305 + $0x158] sm:$0xff]
        %v413 = vld [vmem:[%s305 + $0x160] sm:$0xff]
        %v414 = vld [vmem:[%s305 + $0x168] sm:$0xff]
        %v415 = vld [vmem:[%s305 + $0x170] sm:$0xff]
        %v416 = vld [vmem:[%s305 + $0x178] sm:$0xff]
        %v417 = vld [vmem:[%s305 + $0x180] sm:$0xff]
        %v418 = vld [vmem:[%s305 + $0x188] sm:$0xff]
        %v419 = vld [vmem:[%s305 + $0x190] sm:$0xff]
        %v420 = vld [vmem:[%s305 + $0x198] sm:$0xff]
        %v421 = vld [vmem:[%s305 + $0x1a0] sm:$0xff]
        %v422 = vld [vmem:[%s305 + $0x1a8] sm:$0xff]
        %v423 = vld [vmem:[%s305 + $0x1b0] sm:$0xff]
        %v424 = vld [vmem:[%s305 + $0x1b8] sm:$0xff]
        %v425 = vld [vmem:[%s305 + $0x1c0] sm:$0xff]
        %v426 = vld [vmem:[%s305 + $0x1c8] sm:$0xff]
        %v427 = vld [vmem:[%s305 + $0x1d0] sm:$0xff]
        %v428 = vld [vmem:[%s305 + $0x1d8] sm:$0xff]
        %v429 = vld [vmem:[%s305 + $0x1e0] sm:$0xff]
        %v430 = vld [vmem:[%s305 + $0x1e8] sm:$0xff]
        %v431 = vld [vmem:[%s305 + $0x1f0] sm:$0xff]
        %v432 = vld [vmem:[%s305 + $0x1f8] sm:$0xff]
        %v433 = vld [vmem:[%s305 + $0x200] sm:$0xff]
        %v434 = vld [vmem:[%s305 + $0x208] sm:$0xff]
        %v435 = vld [vmem:[%s305 + $0x210] sm:$0xff]
        %v436 = vld [vmem:[%s305 + $0x218] sm:$0xff]
        %v437 = vld [vmem:[%s305 + $0x220] sm:$0xff]
        %v438 = vld [vmem:[%s305 + $0x228] sm:$0xff]
        %v439 = vld [vmem:[%s305 + $0x230] sm:$0xff]
        %v440 = vld [vmem:[%s305 + $0x238] sm:$0xff]
        %v441 = vld [vmem:[%s305 + $0x240] sm:$0xff]
        %v442 = vld [vmem:[%s305 + $0x248] sm:$0xff]
        %v443 = vld [vmem:[%s305 + $0x250] sm:$0xff]
        %v444 = vld [vmem:[%s305 + $0x258] sm:$0xff]
        %v445 = vld [vmem:[%s305 + $0x260] sm:$0xff]
        %v446 = vld [vmem:[%s305 + $0x268] sm:$0xff]
        %v447 = vld [vmem:[%s305 + $0x270] sm:$0xff]
        %v448 = vld [vmem:[%s305 + $0x278] sm:$0xff]
        %v449 = vld [vmem:[%s305 + $0x280] sm:$0xff]
        %v450 = vld [vmem:[%s305 + $0x288] sm:$0xff]
        %v451 = vld [vmem:[%s305 + $0x290] sm:$0xff]
        %v452 = vld [vmem:[%s305 + $0x298] sm:$0xff]
        %v453 = vld [vmem:[%s305 + $0x2a0] sm:$0xff]
        %v454 = vld [vmem:[%s305 + $0x2a8] sm:$0xff]
        %v455 = vld [vmem:[%s305 + $0x2b0] sm:$0xff]
        %v456 = vld [vmem:[%s305 + $0x2b8] sm:$0xff]
        %v457 = vld [vmem:[%s305 + $0x2c0] sm:$0xff]
        %v458 = vld [vmem:[%s305 + $0x2c8] sm:$0xff]
        %v459 = vld [vmem:[%s305 + $0x2d0] sm:$0xff]
        %v460 = vld [vmem:[%s305 + $0x2d8] sm:$0xff]
        %v461 = vld [vmem:[%s305 + $0x2e0] sm:$0xff]
        %v462 = vld [vmem:[%s305 + $0x2e8] sm:$0xff]
        %v463 = vld [vmem:[%s305 + $0x2f0] sm:$0xff]
        %v464 = vld [vmem:[%s305 + $0x2f8] sm:$0xff]
        %v465 = vld [vmem:[%s360] sm:$0x7]
        %v467 = vlaneseq
        %v468 = vshrl.u32 %v467, 7
        %v469 = vsub.s32 0, %v468
        %v470 = vrot.slane %v465, %v469
        %v471 = vlaneseq
        %v472 = vshrl.u32 %v471, 7
        %v473 = vsub.s32 1, %v472
        %v474 = vrot.slane %v465, %v473
        %v475 = vlaneseq
        %v476 = vshrl.u32 %v475, 7
        %v477 = vsub.s32 2, %v476
        %v478 = vrot.slane %v465, %v477
        %482 = vmatprep.subr.mxu0 %v415
        %483 = vmatpush1.msra.mxu0 %v414
        %484 = vmatprep.subr.mxu0 %v412
        %485 = vmatpush1.msra.mxu0 %v411
        %486 = vmatprep.subr.mxu0 %v409
        %487 = vmatpush1.msra.mxu0 %v408
        %488 = vmatprep.subr.mxu0 %v406
        %489 = vmatpush1.msra.mxu0 %v405
        %490 = vmatprep.subr.mxu0 %v403
        %491 = vmatpush1.msra.mxu0 %v402
        %492 = vmatprep.subr.mxu0 %v400
        %493 = vmatpush1.msra.mxu0 %v399
        %494 = vmatprep.subr.mxu0 %v397
        %495 = vmatpush1.msra.mxu0 %v396
        %496 = vmatprep.subr.mxu0 %v394
        %497 = vmatpush1.msra.mxu0 %v393
        %498 = vmatprep.subr.mxu0 %v391
        %499 = vmatpush1.msra.mxu0 %v390
        %500 = vmatprep.subr.mxu0 %v388
        %501 = vmatpush1.msra.mxu0 %v387
        %502 = vmatprep.subr.mxu0 %v385
        %503 = vmatpush1.msra.mxu0 %v384
        %504 = vmatprep.subr.mxu0 %v382
        %505 = vmatpush1.msra.mxu0 %v381
        %506 = vmatprep.subr.mxu0 %v379
        %507 = vmatpush1.msra.mxu0 %v378
        %508 = vmatprep.subr.mxu0 %v376
        %509 = vmatpush1.msra.mxu0 %v375
        %510 = vmatprep.subr.mxu0 %v373
        %511 = vmatpush1.msra.mxu0 %v372
        %512 = vmatprep.subr.mxu0 %v370
        %513 = vmatpush1.msra.mxu0 %v369
        %514 = vmatprep.subr.mxu0 %v463
        %515 = vmatpush2.msra.mxu0 %v462
        %516 = vmatprep.subr.mxu0 %v460
        %517 = vmatpush2.msra.mxu0 %v459
        %518 = vmatprep.subr.mxu0 %v457
        %519 = vmatpush2.msra.mxu0 %v456
        %520 = vmatprep.subr.mxu0 %v454
        %521 = vmatpush2.msra.mxu0 %v453
        %522 = vmatprep.subr.mxu0 %v451
        %523 = vmatpush2.msra.mxu0 %v450
        %524 = vmatprep.subr.mxu0 %v448
        %525 = vmatpush2.msra.mxu0 %v447
        %526 = vmatprep.subr.mxu0 %v445
        %527 = vmatpush2.msra.mxu0 %v444
        %528 = vmatprep.subr.mxu0 %v442
        %529 = vmatpush2.msra.mxu0 %v441
        %530 = vmatprep.subr.mxu0 %v439
        %531 = vmatpush2.msra.mxu0 %v438
        %532 = vmatprep.subr.mxu0 %v436
        %533 = vmatpush2.msra.mxu0 %v435
        %534 = vmatprep.subr.mxu0 %v433
        %535 = vmatpush2.msra.mxu0 %v432
        %536 = vmatprep.subr.mxu0 %v430
        %537 = vmatpush2.msra.mxu0 %v429
        %538 = vmatprep.subr.mxu0 %v427
        %539 = vmatpush2.msra.mxu0 %v426
        %540 = vmatprep.subr.mxu0 %v424
        %541 = vmatpush2.msra.mxu0 %v423
        %542 = vmatprep.subr.mxu0 %v421
        %543 = vmatpush2.msra.mxu0 %v420
        %544 = vmatprep.subr.mxu0 %v418
        %545 = vmatpush2.msra.mxu0 %v417
        %546 = vmatprep.mubr.f32.mxu0 %v366
        %547 = vmatmul.mubr.f32.gmra.mxu0 %v365
        %v548 = vpop.f32.mrf.mxu0
        %v549 = vadd.f32 %v470, %v548
        %v550 = vpop.f32.mrf.mxu0
        %v551 = vadd.f32 %v474, %v550
        %552 = vdwg.mxu0
        %553 = vmatprep.subr.mxu0 0.0
        %554 = vmatpush1.msra.mxu0 %v416
        %555 = vmatprep.subr.mxu0 0.0
        %556 = vmatpush1.msra.mxu0 %v413
        %557 = vmatprep.subr.mxu0 0.0
        %558 = vmatpush1.msra.mxu0 %v410
        %559 = vmatprep.subr.mxu0 0.0
        %560 = vmatpush1.msra.mxu0 %v407
        %561 = vmatprep.subr.mxu0 0.0
        %562 = vmatpush1.msra.mxu0 %v404
        %563 = vmatprep.subr.mxu0 0.0
        %564 = vmatpush1.msra.mxu0 %v401
        %565 = vmatprep.subr.mxu0 0.0
        %566 = vmatpush1.msra.mxu0 %v398
        %567 = vmatprep.subr.mxu0 0.0
        %568 = vmatpush1.msra.mxu0 %v395
        %569 = vmatprep.subr.mxu0 0.0
        %570 = vmatpush1.msra.mxu0 %v392
        %571 = vmatprep.subr.mxu0 0.0
        %572 = vmatpush1.msra.mxu0 %v389
        %573 = vmatprep.subr.mxu0 0.0
        %574 = vmatpush1.msra.mxu0 %v386
        %575 = vmatprep.subr.mxu0 0.0
        %576 = vmatpush1.msra.mxu0 %v383
        %577 = vmatprep.subr.mxu0 0.0
        %578 = vmatpush1.msra.mxu0 %v380
        %579 = vmatprep.subr.mxu0 0.0
        %580 = vmatpush1.msra.mxu0 %v377
        %581 = vmatprep.subr.mxu0 0.0
        %582 = vmatpush1.msra.mxu0 %v374
        %583 = vmatprep.subr.mxu0 0.0
        %584 = vmatpush1.msra.mxu0 %v371
        %585 = vmatprep.subr.mxu0 0.0
        %586 = vmatpush2.msra.mxu0 %v464
        %587 = vmatprep.subr.mxu0 0.0
        %588 = vmatpush2.msra.mxu0 %v461
        %589 = vmatprep.subr.mxu0 0.0
        %590 = vmatpush2.msra.mxu0 %v458
        %591 = vmatprep.subr.mxu0 0.0
        %592 = vmatpush2.msra.mxu0 %v455
        %593 = vmatprep.subr.mxu0 0.0
        %594 = vmatpush2.msra.mxu0 %v452
        %595 = vmatprep.subr.mxu0 0.0
        %596 = vmatpush2.msra.mxu0 %v449
        %597 = vmatprep.subr.mxu0 0.0
        %598 = vmatpush2.msra.mxu0 %v446
        %599 = vmatprep.subr.mxu0 0.0
        %600 = vmatpush2.msra.mxu0 %v443
        %601 = vmatprep.subr.mxu0 0.0
        %602 = vmatpush2.msra.mxu0 %v440
        %603 = vmatprep.subr.mxu0 0.0
        %604 = vmatpush2.msra.mxu0 %v437
        %605 = vmatprep.subr.mxu0 0.0
        %606 = vmatpush2.msra.mxu0 %v434
        %607 = vmatprep.subr.mxu0 0.0
        %608 = vmatpush2.msra.mxu0 %v431
        %609 = vmatprep.subr.mxu0 0.0
        %610 = vmatpush2.msra.mxu0 %v428
        %611 = vmatprep.subr.mxu0 0.0
        %612 = vmatpush2.msra.mxu0 %v425
        %613 = vmatprep.subr.mxu0 0.0
        %614 = vmatpush2.msra.mxu0 %v422
        %615 = vmatprep.subr.mxu0 0.0
        %616 = vmatpush2.msra.mxu0 %v419
        %617 = vmatprep.mubr.f32.mxu0 %v366
        %618 = vmatmul.mubr.f32.gmra.mxu0 %v365
        %v619 = vpop.f32.mrf.mxu0
        %v620 = vadd.f32 %v478, %v619
        %v621 = vpop.f32.mrf.mxu0
        %622 = vdwg.mxu0
        %v623 = vld [vmem:[%s314] sm:$0xff]
        %v624 = vld [vmem:[%s314 + $0x8] sm:$0xff]
        %v625 = vld [vmem:[%s314 + $0x10] sm:$0xff]
        %v626 = vld [vmem:[%s314 + $0x18] sm:$0xff]
        %v627 = vld [vmem:[%s314 + $0x20] sm:$0xff]
        %v628 = vld [vmem:[%s314 + $0x28] sm:$0xff]
        %v629 = vld [vmem:[%s314 + $0x30] sm:$0xff]
        %v630 = vld [vmem:[%s314 + $0x38] sm:$0xff]
        %v631 = vld [vmem:[%s314 + $0x40] sm:$0xff]
        %v632 = vld [vmem:[%s314 + $0x48] sm:$0xff]
        %v633 = vld [vmem:[%s314 + $0x50] sm:$0xff]
        %v634 = vld [vmem:[%s314 + $0x58] sm:$0xff]
        %v635 = vld [vmem:[%s314 + $0x60] sm:$0xff]
        %v636 = vld [vmem:[%s314 + $0x68] sm:$0xff]
        %v637 = vld [vmem:[%s314 + $0x70] sm:$0xff]
        %v638 = vld [vmem:[%s314 + $0x78] sm:$0xff]
        %v639 = vld [vmem:[%s314 + $0x80] sm:$0xff]
        %v640 = vld [vmem:[%s314 + $0x88] sm:$0xff]
        %v641 = vld [vmem:[%s314 + $0x90] sm:$0xff]
        %v642 = vld [vmem:[%s314 + $0x98] sm:$0xff]
        %v643 = vld [vmem:[%s314 + $0xa0] sm:$0xff]
        %v644 = vld [vmem:[%s314 + $0xa8] sm:$0xff]
        %v645 = vld [vmem:[%s314 + $0xb0] sm:$0xff]
        %v646 = vld [vmem:[%s314 + $0xb8] sm:$0xff]
        %v647 = vld [vmem:[%s314 + $0xc0] sm:$0xff]
        %v648 = vld [vmem:[%s314 + $0xc8] sm:$0xff]
        %v649 = vld [vmem:[%s314 + $0xd0] sm:$0xff]
        %v650 = vld [vmem:[%s314 + $0xd8] sm:$0xff]
        %v651 = vld [vmem:[%s314 + $0xe0] sm:$0xff]
        %v652 = vld [vmem:[%s314 + $0xe8] sm:$0xff]
        %v653 = vld [vmem:[%s314 + $0xf0] sm:$0xff]
        %v654 = vld [vmem:[%s314 + $0xf8] sm:$0xff]
        %v655 = vld [vmem:[%s314 + $0x100] sm:$0xff]
        %v656 = vld [vmem:[%s314 + $0x108] sm:$0xff]
        %v657 = vld [vmem:[%s314 + $0x110] sm:$0xff]
        %v658 = vld [vmem:[%s314 + $0x118] sm:$0xff]
        %v659 = vld [vmem:[%s314 + $0x120] sm:$0xff]
        %v660 = vld [vmem:[%s314 + $0x128] sm:$0xff]
        %v661 = vld [vmem:[%s314 + $0x130] sm:$0xff]
        %v662 = vld [vmem:[%s314 + $0x138] sm:$0xff]
        %v663 = vld [vmem:[%s314 + $0x140] sm:$0xff]
        %v664 = vld [vmem:[%s314 + $0x148] sm:$0xff]
        %v665 = vld [vmem:[%s314 + $0x150] sm:$0xff]
        %v666 = vld [vmem:[%s314 + $0x158] sm:$0xff]
        %v667 = vld [vmem:[%s314 + $0x160] sm:$0xff]
        %v668 = vld [vmem:[%s314 + $0x168] sm:$0xff]
        %v669 = vld [vmem:[%s314 + $0x170] sm:$0xff]
        %v670 = vld [vmem:[%s314 + $0x178] sm:$0xff]
        %v671 = vld [vmem:[%s314 + $0x180] sm:$0xff]
        %v672 = vld [vmem:[%s314 + $0x188] sm:$0xff]
        %v673 = vld [vmem:[%s314 + $0x190] sm:$0xff]
        %v674 = vld [vmem:[%s314 + $0x198] sm:$0xff]
        %v675 = vld [vmem:[%s314 + $0x1a0] sm:$0xff]
        %v676 = vld [vmem:[%s314 + $0x1a8] sm:$0xff]
        %v677 = vld [vmem:[%s314 + $0x1b0] sm:$0xff]
        %v678 = vld [vmem:[%s314 + $0x1b8] sm:$0xff]
        %v679 = vld [vmem:[%s314 + $0x1c0] sm:$0xff]
        %v680 = vld [vmem:[%s314 + $0x1c8] sm:$0xff]
        %v681 = vld [vmem:[%s314 + $0x1d0] sm:$0xff]
        %v682 = vld [vmem:[%s314 + $0x1d8] sm:$0xff]
        %v683 = vld [vmem:[%s314 + $0x1e0] sm:$0xff]
        %v684 = vld [vmem:[%s314 + $0x1e8] sm:$0xff]
        %v685 = vld [vmem:[%s314 + $0x1f0] sm:$0xff]
        %v686 = vld [vmem:[%s314 + $0x1f8] sm:$0xff]
        %v687 = vld [vmem:[%s314 + $0x200] sm:$0xff]
        %v688 = vld [vmem:[%s314 + $0x208] sm:$0xff]
        %v689 = vld [vmem:[%s314 + $0x210] sm:$0xff]
        %v690 = vld [vmem:[%s314 + $0x218] sm:$0xff]
        %v691 = vld [vmem:[%s314 + $0x220] sm:$0xff]
        %v692 = vld [vmem:[%s314 + $0x228] sm:$0xff]
        %v693 = vld [vmem:[%s314 + $0x230] sm:$0xff]
        %v694 = vld [vmem:[%s314 + $0x238] sm:$0xff]
        %v695 = vld [vmem:[%s314 + $0x240] sm:$0xff]
        %v696 = vld [vmem:[%s314 + $0x248] sm:$0xff]
        %v697 = vld [vmem:[%s314 + $0x250] sm:$0xff]
        %v698 = vld [vmem:[%s314 + $0x258] sm:$0xff]
        %v699 = vld [vmem:[%s314 + $0x260] sm:$0xff]
        %v700 = vld [vmem:[%s314 + $0x268] sm:$0xff]
        %v701 = vld [vmem:[%s314 + $0x270] sm:$0xff]
        %v702 = vld [vmem:[%s314 + $0x278] sm:$0xff]
        %v703 = vld [vmem:[%s314 + $0x280] sm:$0xff]
        %v704 = vld [vmem:[%s314 + $0x288] sm:$0xff]
        %v705 = vld [vmem:[%s314 + $0x290] sm:$0xff]
        %v706 = vld [vmem:[%s314 + $0x298] sm:$0xff]
        %v707 = vld [vmem:[%s314 + $0x2a0] sm:$0xff]
        %v708 = vld [vmem:[%s314 + $0x2a8] sm:$0xff]
        %v709 = vld [vmem:[%s314 + $0x2b0] sm:$0xff]
        %v710 = vld [vmem:[%s314 + $0x2b8] sm:$0xff]
        %v711 = vld [vmem:[%s314 + $0x2c0] sm:$0xff]
        %v712 = vld [vmem:[%s314 + $0x2c8] sm:$0xff]
        %v713 = vld [vmem:[%s314 + $0x2d0] sm:$0xff]
        %v714 = vld [vmem:[%s314 + $0x2d8] sm:$0xff]
        %v715 = vld [vmem:[%s314 + $0x2e0] sm:$0xff]
        %v716 = vld [vmem:[%s314 + $0x2e8] sm:$0xff]
        %v717 = vld [vmem:[%s314 + $0x2f0] sm:$0xff]
        %v718 = vld [vmem:[%s314 + $0x2f8] sm:$0xff]
        %719 = vmatprep.subr.mxu0 %v669
        %720 = vmatpush1.msra.mxu0 %v668
        %721 = vmatprep.subr.mxu0 %v666
        %722 = vmatpush1.msra.mxu0 %v665
        %723 = vmatprep.subr.mxu0 %v663
        %724 = vmatpush1.msra.mxu0 %v662
        %725 = vmatprep.subr.mxu0 %v660
        %726 = vmatpush1.msra.mxu0 %v659
        %727 = vmatprep.subr.mxu0 %v657
        %728 = vmatpush1.msra.mxu0 %v656
        %729 = vmatprep.subr.mxu0 %v654
        %730 = vmatpush1.msra.mxu0 %v653
        %731 = vmatprep.subr.mxu0 %v651
        %732 = vmatpush1.msra.mxu0 %v650
        %733 = vmatprep.subr.mxu0 %v648
        %734 = vmatpush1.msra.mxu0 %v647
        %735 = vmatprep.subr.mxu0 %v645
        %736 = vmatpush1.msra.mxu0 %v644
        %737 = vmatprep.subr.mxu0 %v642
        %738 = vmatpush1.msra.mxu0 %v641
        %739 = vmatprep.subr.mxu0 %v639
        %740 = vmatpush1.msra.mxu0 %v638
        %741 = vmatprep.subr.mxu0 %v636
        %742 = vmatpush1.msra.mxu0 %v635
        %743 = vmatprep.subr.mxu0 %v633
        %744 = vmatpush1.msra.mxu0 %v632
        %745 = vmatprep.subr.mxu0 %v630
        %746 = vmatpush1.msra.mxu0 %v629
        %747 = vmatprep.subr.mxu0 %v627
        %748 = vmatpush1.msra.mxu0 %v626
        %749 = vmatprep.subr.mxu0 %v624
        %750 = vmatpush1.msra.mxu0 %v623
        %751 = vmatprep.subr.mxu0 %v717
        %752 = vmatpush2.msra.mxu0 %v716
        %753 = vmatprep.subr.mxu0 %v714
        %754 = vmatpush2.msra.mxu0 %v713
        %755 = vmatprep.subr.mxu0 %v711
        %756 = vmatpush2.msra.mxu0 %v710
        %757 = vmatprep.subr.mxu0 %v708
        %758 = vmatpush2.msra.mxu0 %v707
        %759 = vmatprep.subr.mxu0 %v705
        %760 = vmatpush2.msra.mxu0 %v704
        %761 = vmatprep.subr.mxu0 %v702
        %762 = vmatpush2.msra.mxu0 %v701
        %763 = vmatprep.subr.mxu0 %v699
        %764 = vmatpush2.msra.mxu0 %v698
        %765 = vmatprep.subr.mxu0 %v696
        %766 = vmatpush2.msra.mxu0 %v695
        %767 = vmatprep.subr.mxu0 %v693
        %768 = vmatpush2.msra.mxu0 %v692
        %769 = vmatprep.subr.mxu0 %v690
        %770 = vmatpush2.msra.mxu0 %v689
        %771 = vmatprep.subr.mxu0 %v687
        %772 = vmatpush2.msra.mxu0 %v686
        %773 = vmatprep.subr.mxu0 %v684
        %774 = vmatpush2.msra.mxu0 %v683
        %775 = vmatprep.subr.mxu0 %v681
        %776 = vmatpush2.msra.mxu0 %v680
        %777 = vmatprep.subr.mxu0 %v678
        %778 = vmatpush2.msra.mxu0 %v677
        %779 = vmatprep.subr.mxu0 %v675
        %780 = vmatpush2.msra.mxu0 %v674
        %781 = vmatprep.subr.mxu0 %v672
        %782 = vmatpush2.msra.mxu0 %v671
        %783 = vmatprep.mubr.f32.mxu0 %v368
        %784 = vmatmul.mubr.f32.gmra.mxu0 %v367
        %v785 = vpop.f32.mrf.mxu0
        %v786 = vadd.f32 0.0, %v785
        %v787 = vpop.f32.mrf.mxu0
        %v788 = vadd.f32 0.0, %v787
        %789 = vdwg.mxu0
        %790 = vmatprep.subr.mxu0 0.0
        %791 = vmatpush1.msra.mxu0 %v670
        %792 = vmatprep.subr.mxu0 0.0
        %793 = vmatpush1.msra.mxu0 %v667
        %794 = vmatprep.subr.mxu0 0.0
        %795 = vmatpush1.msra.mxu0 %v664
        %796 = vmatprep.subr.mxu0 0.0
        %797 = vmatpush1.msra.mxu0 %v661
        %798 = vmatprep.subr.mxu0 0.0
        %799 = vmatpush1.msra.mxu0 %v658
        %800 = vmatprep.subr.mxu0 0.0
        %801 = vmatpush1.msra.mxu0 %v655
        %802 = vmatprep.subr.mxu0 0.0
        %803 = vmatpush1.msra.mxu0 %v652
        %804 = vmatprep.subr.mxu0 0.0
        %805 = vmatpush1.msra.mxu0 %v649
        %806 = vmatprep.subr.mxu0 0.0
        %807 = vmatpush1.msra.mxu0 %v646
        %808 = vmatprep.subr.mxu0 0.0
        %809 = vmatpush1.msra.mxu0 %v643
        %810 = vmatprep.subr.mxu0 0.0
        %811 = vmatpush1.msra.mxu0 %v640
        %812 = vmatprep.subr.mxu0 0.0
        %813 = vmatpush1.msra.mxu0 %v637
        %814 = vmatprep.subr.mxu0 0.0
        %815 = vmatpush1.msra.mxu0 %v634
        %816 = vmatprep.subr.mxu0 0.0
        %817 = vmatpush1.msra.mxu0 %v631
        %818 = vmatprep.subr.mxu0 0.0
        %819 = vmatpush1.msra.mxu0 %v628
        %820 = vmatprep.subr.mxu0 0.0
        %821 = vmatpush1.msra.mxu0 %v625
        %822 = vmatprep.subr.mxu0 0.0
        %823 = vmatpush2.msra.mxu0 %v718
        %824 = vmatprep.subr.mxu0 0.0
        %825 = vmatpush2.msra.mxu0 %v715
        %826 = vmatprep.subr.mxu0 0.0
        %827 = vmatpush2.msra.mxu0 %v712
        %828 = vmatprep.subr.mxu0 0.0
        %829 = vmatpush2.msra.mxu0 %v709
        %830 = vmatprep.subr.mxu0 0.0
        %831 = vmatpush2.msra.mxu0 %v706
        %832 = vmatprep.subr.mxu0 0.0
        %833 = vmatpush2.msra.mxu0 %v703
        %834 = vmatprep.subr.mxu0 0.0
        %835 = vmatpush2.msra.mxu0 %v700
        %836 = vmatprep.subr.mxu0 0.0
        %837 = vmatpush2.msra.mxu0 %v697
        %838 = vmatprep.subr.mxu0 0.0
        %839 = vmatpush2.msra.mxu0 %v694
        %840 = vmatprep.subr.mxu0 0.0
        %841 = vmatpush2.msra.mxu0 %v691
        %842 = vmatprep.subr.mxu0 0.0
        %843 = vmatpush2.msra.mxu0 %v688
        %844 = vmatprep.subr.mxu0 0.0
        %845 = vmatpush2.msra.mxu0 %v685
        %846 = vmatprep.subr.mxu0 0.0
        %847 = vmatpush2.msra.mxu0 %v682
        %848 = vmatprep.subr.mxu0 0.0
        %849 = vmatpush2.msra.mxu0 %v679
        %850 = vmatprep.subr.mxu0 0.0
        %851 = vmatpush2.msra.mxu0 %v676
        %852 = vmatprep.subr.mxu0 0.0
        %853 = vmatpush2.msra.mxu0 %v673
        %854 = vmatprep.mubr.f32.mxu0 %v368
        %855 = vmatmul.mubr.f32.gmra.mxu0 %v367
        %v856 = vpop.f32.mrf.mxu0
        %v857 = vadd.f32 0.0, %v856
        %v858 = vpop.f32.mrf.mxu0
        %859 = vdwg.mxu0
        %v860 = vadd.f32 %v549, %v786
        %v861 = vxor.u32 %v860, 2147483648
        %v862 = vmul.f32 %v861, 1.442695
        %v863 = vpow.pop %v862
        %v864 = vadd.f32 %v863, 1.0
        %v865 = vrcp.pop %v864
        %v866 = vmul.f32 1.0, %v865
        %v867 = vadd.f32 %v551, %v788
        %v868 = vxor.u32 %v867, 2147483648
        %v869 = vmul.f32 %v868, 1.442695
        %v870 = vpow.pop %v869
        %v871 = vadd.f32 %v870, 1.0
        %v872 = vrcp.pop %v871
        %v873 = vmul.f32 1.0, %v872
        %v874 = vld [vmem:[%s364] sm:$0x1]
        %v876 = vlaneseq
        %v877 = vshrl.u32 %v876, 7
        %v878 = vsub.s32 0, %v877
        %v879 = vrot.slane %v874, %v878
        %v881 = vadd.f32 %v857, %v879
        %v882 = vmul.f32 %v866, %v881
        %v883 = vadd.f32 %v620, %v882
        %v884 = vtanh.pop %v883
        %p885 = scmp.eq.s32.totalorder %s22, 1
        %s886 = scalar_select %p885, 1, 0
        %v887 = vstv %s886
        %vm888 = vcmp.eq.s32.totalorder %v887, 1
        %v889 = vsel %vm888, %v366, %v365
        %v890 = vmul.f32 %v873, %v884
        %v891 = vsub.f32 1.0, %v873
        %v892 = vmul.f32 %v891, %v889
        %v893 = vadd.f32 %v890, %v892
        %894 = vst [vmem:[%s354] sm:$0xff] %v893
        %s895 = sand.u32 %s176, 1
        %s896 = scalar_lea.sflag [#allocation4], %s895
        %s897 = sand.u32 %s176, 1
        %s898 = smul.addr %s897, 8
        %s899 = scalar_lea.vmem [#allocation9], %s898
        // Predicated region
        $region61: #{gru_cell_mod.1} parent=43 // pred_check
          %p900 = pneg %p186
        $region62: #{gru_cell_mod.1} parent=43 // pred_check_branch
          %902 = sbr.rel (%p900) target = $region64
        $region63: #{gru_cell_mod.1} parent=43 // pred_region
          %s904 = ssub.s32 128, 128
          %905 = vsyncadd %s896, %s904
          %s906 = smul.addr %s22, 128
          %s907 = scalar_lea.hbm %s6, %s906
          %s909 = sshll.u32 %s899, 4
          %s910 = int_to_ptr.vmem [resolvable:$true] %s909
          %912 = dma.vmem_to_hbm [thread:$0]  %s910, 128, %s907, %s896
        $region64: #{gru_cell_mod.1} parent=43 // pred_fallthru
          _
      $region44: #{gru_cell_mod.1} parent=5 // pred_fallthru
        _
      %p913 = scmp.le.s32.totalorder 2, %s17
      // Predicated region
      $region65: #{gru_cell_mod.1} parent=5 // pred_check
        %p914 = pneg %p913
      $region66: #{gru_cell_mod.1} parent=5 // pred_check_branch
        %916 = sbr.rel (%p914) target = $region68
      $region67: #{gru_cell_mod.1} parent=5 // pred_region
        %s917 = ssub.s32 %s17, 2
        // Predicated region
        $region69: #{gru_cell_mod.1} parent=67 // pred_check
          %p918 = pneg %p192
        $region70: #{gru_cell_mod.1} parent=67 // pred_check_branch
          %920 = sbr.rel (%p918) target = $region72
        $region71: #{gru_cell_mod.1} parent=67 // pred_region
          %s921 = sand.u32 %s177, 1
          %s922 = scalar_lea.sflag [#allocation4], %s921
          %s923 = sand.u32 %s177, 1
          %s924 = smul.addr %s923, 8
          %s925 = scalar_lea.vmem [#allocation9], %s924
          %926 = dma.done %s922, 128
        $region72: #{gru_cell_mod.1} parent=67 // pred_fallthru
          _
      $region68: #{gru_cell_mod.1} parent=5 // pred_fallthru
        _
    $region6: #{gru_cell_mod.1} parent=1 // loop_footer
      %s21 = sadd.s32 1, %s17
    $region7: #{gru_cell_mod.1} parent=1 // loop_footer_branch
      %16 = sbr.rel target = $region3
    $region8: #{gru_cell_mod.1} parent=1 // loop_exit
      _
    %927 = vsyncpa [#allocation3], 1
    %s928 = scalar_lea.sflag [#allocation3], 1
    %929 = vsyncpa %s928, 1
    %930 = vsyncpa [#allocation6], 1
    %931 = vsyncpa [#allocation4], 1
    %s932 = scalar_lea.sflag [#allocation4], 1
    %933 = vsyncpa %s932, 1

</llo_original>
